<compile_context>
chip_gen: v5e
topology: v5e:2x2
jax: 0.10.0
libtpu: 0.0.40
codegen_flags: <defaults>
</compile_context>

<pallas_src>
import functools

import jax
import jax.numpy as jnp
from jax.experimental import pallas as pl
from jax.experimental.pallas import tpu as pltpu


def _mm(a, b):
    return jnp.dot(a, b, preferred_element_type=jnp.float32)


def _sccnn_kernel(conv_order,
                  l0_ref, l1d_ref, l1u_ref, l2_ref,
                  b1_ref, b1t_ref, b2_ref, b2t_ref,
                  x0_ref, x1_ref, x2_ref,
                  w0_ref, w1_ref, w2_ref,
                  y0_ref, y1_ref, y2_ref):
    """Single-program kernel: all operands resident in VMEM (small SC sizes)."""
    K = conv_order

    def cheb_concat(op, seed):
        # [seed | op@seed | op^2@seed | ... | op^K@seed], concatenated on lanes.
        blocks = [seed]
        z = seed
        for _ in range(K):
            z = _mm(op, z)
            blocks.append(z)
        return jnp.concatenate(blocks, axis=1)

    x0 = x0_ref[...]
    x1 = x1_ref[...]
    x2 = x2_ref[...]

    # ----- rank 0 (nodes): L0 shared over [x0 | B1@x1], one fused contraction -----
    seed0 = jnp.concatenate([x0, _mm(b1_ref[...], x1)], axis=1)
    xall0 = cheb_concat(l0_ref[...], seed0)                       # (n0, (K+1)*2C)
    y0_ref[...] = _mm(xall0, w0_ref[...]).astype(y0_ref.dtype)

    # ----- rank 1 (edges): L1d over [B1^T@x0 | x1], L1u over [x1 | B2@x2] -----
    seed_d = jnp.concatenate([_mm(b1t_ref[...], x0), x1], axis=1)
    seed_u = jnp.concatenate([x1, _mm(b2_ref[...], x2)], axis=1)
    xall1 = jnp.concatenate(
        [cheb_concat(l1d_ref[...], seed_d),
         cheb_concat(l1u_ref[...], seed_u)], axis=1)              # (n1, 2*(K+1)*2C)
    y1_ref[...] = _mm(xall1, w1_ref[...]).astype(y1_ref.dtype)

    # ----- rank 2 (triangles, sc_order==2): L2 shared over [x2 | B2^T@x1] -----
    seed2 = jnp.concatenate([x2, _mm(b2t_ref[...], x1)], axis=1)
    xall2 = cheb_concat(l2_ref[...], seed2)                       # (n2, (K+1)*2C)
    y2_ref[...] = _mm(xall2, w2_ref[...]).astype(y2_ref.dtype)


def _pad128(c):
    return ((c + 127) // 128) * 128


def _flatten_weight(w, col_terms, c_out_pad):
    """(C_in, C_out, T) -> (len(col_terms)*C_in, c_out_pad), matching the
    column order the kernel produces; `None` entries become zero blocks
    (duplicated identity term shared between the two rank-1 recursions)."""
    c_in, c_out, _ = w.shape
    zero = jnp.zeros((c_in, c_out), w.dtype)
    blocks = [zero if t is None else w[:, :, t] for t in col_terms]
    w_flat = jnp.concatenate(blocks, axis=0)
    if c_out_pad > c_out:
        w_flat = jnp.pad(w_flat, ((0, 0), (0, c_out_pad - c_out)))
    return w_flat


def sccnn_layer_forward(x_all, laplacian_all, incidence_all, weights, conv_order):
    """Pallas SCCNN forward. Weights in PyTorch layout (C_in, C_out, T)."""
    x0, x1, x2 = x_all
    l0, l1d, l1u, l2 = laplacian_all
    b1, b2 = incidence_all
    w0, w1, w2 = weights
    K = conv_order

    o0, o1, o2 = w0.shape[1], w1.shape[1], w2.shape[1]
    o0p, o1p, o2p = _pad128(o0), _pad128(o1), _pad128(o2)

    # Reference weight-slice indices, reordered to the kernel's column layout.
    terms0 = [t for k in range(K + 1) for t in (k, K + 1 + k)]
    terms1 = ([t for k in range(K + 1) for t in (k, K + 1 + k)]
              + [t for k in range(K + 1)
                 for t in ((None if k == 0 else 2 * K + 1 + k), 3 * K + 2 + k)])
    terms2 = [t for k in range(K + 1) for t in (k, K + 1 + k)]

    w0_flat = _flatten_weight(w0, terms0, o0p)
    w1_flat = _flatten_weight(w1, terms1, o1p)
    w2_flat = _flatten_weight(w2, terms2, o2p)

    # One-time host transposes (avoid in-kernel relayout of B^T).
    b1t = jnp.transpose(b1)
    b2t = jnp.transpose(b2)

    n0, n1, n2 = x0.shape[0], x1.shape[0], x2.shape[0]

    operands = (l0, l1d, l1u, l2, b1, b1t, b2, b2t, x0, x1, x2,
                w0_flat, w1_flat, w2_flat)

    # Size scoped VMEM from the actual resident operands (+ padded outputs).
    resident = sum(int(a.size) * a.dtype.itemsize for a in operands)
    resident += (n0 * o0p + n1 * o1p + n2 * o2p) * 4
    vmem_limit = min(max(2 * resident + (8 << 20), 32 << 20), 100 << 20)

    vmem = pl.BlockSpec(memory_space=pltpu.MemorySpace.VMEM)
    kernel = functools.partial(_sccnn_kernel, K)

    y0p, y1p, y2p = pl.pallas_call(
        kernel,
        out_shape=(
            jax.ShapeDtypeStruct((n0, o0p), jnp.float32),
            jax.ShapeDtypeStruct((n1, o1p), jnp.float32),
            jax.ShapeDtypeStruct((n2, o2p), jnp.float32),
        ),
        in_specs=[vmem] * len(operands),
        out_specs=(vmem, vmem, vmem),
        compiler_params=pltpu.CompilerParams(vmem_limit_bytes=vmem_limit),
    )(*operands)

    return y0p[:, :o0], y1p[:, :o1], y2p[:, :o2]


# ---------------- pure-JAX reference (mirrors the PyTorch forward) ----------------
def _cheb(op, k, x):
    out, z = [], x
    for _ in range(k):
        z = op @ z
        out.append(z)
    return out


def _reference(x_all, laplacian_all, incidence_all, weights, K):
    x0, x1, x2 = x_all
    l0, l1d, l1u, l2 = laplacian_all
    b1, b2 = incidence_all
    w0, w1, w2 = weights

    x00 = [x0] + _cheb(l0, K, x0)
    x10b = b1 @ x1
    x10 = [x10b] + _cheb(l0, K, x10b)
    x0_all = jnp.stack(x00 + x10, axis=2)

    x01b = b1.T @ x0
    x01 = [x01b] + _cheb(l1d, K, x01b)
    x11 = [x1] + _cheb(l1d, K, x1) + _cheb(l1u, K, x1)
    x21b = b2 @ x2
    x21 = [x21b] + _cheb(l1u, K, x21b)
    x1_all = jnp.stack(x01 + x11 + x21, axis=2)

    x22 = [x2] + _cheb(l2, K, x2)
    x12b = b2.T @ x1
    x12 = [x12b] + _cheb(l2, K, x12b)
    x2_all = jnp.stack(x22 + x12, axis=2)

    y0 = jnp.einsum('nik,iok->no', x0_all, w0)
    y1 = jnp.einsum('nik,iok->no', x1_all, w1)
    y2 = jnp.einsum('nik,iok->no', x2_all, w2)
    return y0, y1, y2


def _xavier_normal(key, shape, gain=1.414):
    # PyTorch fan convention for 3D (C_in, C_out, T): fan_in = C_out*T, fan_out = C_in*T
    c_in, c_out, t = shape
    fan_in, fan_out = c_out * t, c_in * t
    std = gain * (2.0 / (fan_in + fan_out)) ** 0.5
    return std * jax.random.normal(key, shape, dtype=jnp.float32)


if __name__ == "__main__":
    # Small, deterministic simplicial complex sizes.
    n_nodes, n_edges, n_tri = 16, 32, 8
    c_in = 16
    c_out0 = c_out1 = c_out2 = 16
    conv_order = 2        # K
    sc_order = 2          # -> weight_2 has 2*(K+1) orders

    key = jax.random.PRNGKey(0)
    keys = jax.random.split(key, 12)

    x0 = jax.random.normal(keys[0], (n_nodes, c_in), dtype=jnp.float32)
    x1 = jax.random.normal(keys[1], (n_edges, c_in), dtype=jnp.float32)
    x2 = jax.random.normal(keys[2], (n_tri, c_in), dtype=jnp.float32)

    # Dense stand-ins for the (sparse) Laplacians / incidences; symmetric Laplacians.
    def sym(k, n):
        a = jax.random.normal(k, (n, n), dtype=jnp.float32) * 0.1
        return a + a.T

    l0 = sym(keys[3], n_nodes)
    l1d = sym(keys[4], n_edges)
    l1u = sym(keys[5], n_edges)
    l2 = sym(keys[6], n_tri)
    b1 = jax.random.normal(keys[7], (n_nodes, n_edges), dtype=jnp.float32) * 0.1
    b2 = jax.random.normal(keys[8], (n_edges, n_tri), dtype=jnp.float32) * 0.1

    t0 = 2 * (conv_order + 1)                 # 1+K + 1+K
    t1 = 3 + 4 * conv_order                   # 1+K + 1+2K + 1+K
    t2 = 2 * (conv_order + 1)                 # sc_order == 2
    w0 = _xavier_normal(keys[9], (c_in, c_out0, t0))
    w1 = _xavier_normal(keys[10], (c_in, c_out1, t1))
    w2 = _xavier_normal(keys[11], (c_in, c_out2, t2))

    # TODO(synk): aggr_norm=True (sparse row-degree normalization) and the optional
    # sigmoid/relu update are not exercised here (module defaults are False / None).

    x_all = (x0, x1, x2)
    laps = (l0, l1d, l1u, l2)
    incs = (b1, b2)
    weights = (w0, w1, w2)

    y0, y1, y2 = sccnn_layer_forward(x_all, laps, incs, weights, conv_order)
    jax.block_until_ready((y0, y1, y2))

    r0, r1, r2 = _reference(x_all, laps, incs, weights, conv_order)
    assert jnp.allclose(y0, r0, rtol=1e-4, atol=1e-4)
    assert jnp.allclose(y1, r1, rtol=1e-4, atol=1e-4)
    assert jnp.allclose(y2, r2, rtol=1e-4, atol=1e-4)

    print("KERNEL_OK")
</pallas_src>

<mosaic_0001>
module attributes {stable_mosaic.version = 11 : i64} {
  func.func @_sccnn_kernel(%arg0: memref<16x16xf32, #tpu.memory_space<vmem>>, %arg1: memref<32x32xf32, #tpu.memory_space<vmem>>, %arg2: memref<32x32xf32, #tpu.memory_space<vmem>>, %arg3: memref<8x8xf32, #tpu.memory_space<vmem>>, %arg4: memref<16x32xf32, #tpu.memory_space<vmem>>, %arg5: memref<32x16xf32, #tpu.memory_space<vmem>>, %arg6: memref<32x8xf32, #tpu.memory_space<vmem>>, %arg7: memref<8x32xf32, #tpu.memory_space<vmem>>, %arg8: memref<16x16xf32, #tpu.memory_space<vmem>>, %arg9: memref<32x16xf32, #tpu.memory_space<vmem>>, %arg10: memref<8x16xf32, #tpu.memory_space<vmem>>, %arg11: memref<96x128xf32, #tpu.memory_space<vmem>>, %arg12: memref<192x128xf32, #tpu.memory_space<vmem>>, %arg13: memref<96x128xf32, #tpu.memory_space<vmem>>, %arg14: memref<16x128xf32, #tpu.memory_space<vmem>>, %arg15: memref<32x128xf32, #tpu.memory_space<vmem>>, %arg16: memref<8x128xf32, #tpu.memory_space<vmem>>) attributes {dimension_semantics = [], scalar_prefetch = 0 : i64, scratch_operands = 0 : i64, tpu.core_type = #tpu.core_type<tc>} {
    %c0 = arith.constant 0 : index
    %c0_0 = arith.constant 0 : index
    %0 = vector.load %arg8[%c0, %c0_0] : memref<16x16xf32, #tpu.memory_space<vmem>>, vector<16x16xf32>
    %c0_1 = arith.constant 0 : index
    %c0_2 = arith.constant 0 : index
    %1 = vector.load %arg9[%c0_1, %c0_2] : memref<32x16xf32, #tpu.memory_space<vmem>>, vector<32x16xf32>
    %c0_3 = arith.constant 0 : index
    %c0_4 = arith.constant 0 : index
    %2 = vector.load %arg10[%c0_3, %c0_4] : memref<8x16xf32, #tpu.memory_space<vmem>>, vector<8x16xf32>
    %c0_5 = arith.constant 0 : index
    %c0_6 = arith.constant 0 : index
    %3 = vector.load %arg4[%c0_5, %c0_6] : memref<16x32xf32, #tpu.memory_space<vmem>>, vector<16x32xf32>
    %cst = arith.constant dense<0.000000e+00> : vector<16x16xf32>
    %4 = tpu.matmul %3, %1, %cst {dimension_numbers = #tpu.dot_dimension_numbers<[1], [0], [0], [1], [0, 0, 1, 1], [], []>} : vector<16x32xf32>, vector<32x16xf32>, vector<16x16xf32> -> vector<16x16xf32>
    %5 = tpu.concatenate %0, %4 in 1 : vector<16x16xf32>, vector<16x16xf32> -> vector<16x32xf32>
    %c0_7 = arith.constant 0 : index
    %c0_8 = arith.constant 0 : index
    %6 = vector.load %arg0[%c0_7, %c0_8] : memref<16x16xf32, #tpu.memory_space<vmem>>, vector<16x16xf32>
    %cst_9 = arith.constant dense<0.000000e+00> : vector<16x32xf32>
    %7 = tpu.matmul %6, %5, %cst_9 {dimension_numbers = #tpu.dot_dimension_numbers<[1], [0], [0], [1], [0, 0, 1, 1], [], []>} : vector<16x16xf32>, vector<16x32xf32>, vector<16x32xf32> -> vector<16x32xf32>
    %cst_10 = arith.constant dense<0.000000e+00> : vector<16x32xf32>
    %8 = tpu.matmul %6, %7, %cst_10 {dimension_numbers = #tpu.dot_dimension_numbers<[1], [0], [0], [1], [0, 0, 1, 1], [], []>} : vector<16x16xf32>, vector<16x32xf32>, vector<16x32xf32> -> vector<16x32xf32>
    %9 = tpu.concatenate %5, %7, %8 in 1 : vector<16x32xf32>, vector<16x32xf32>, vector<16x32xf32> -> vector<16x96xf32>
    %c0_11 = arith.constant 0 : index
    %c0_12 = arith.constant 0 : index
    %10 = vector.load %arg11[%c0_11, %c0_12] : memref<96x128xf32, #tpu.memory_space<vmem>>, vector<96x128xf32>
    %cst_13 = arith.constant dense<0.000000e+00> : vector<16x128xf32>
    %11 = tpu.matmul %9, %10, %cst_13 {dimension_numbers = #tpu.dot_dimension_numbers<[1], [0], [0], [1], [0, 0, 1, 1], [], []>} : vector<16x96xf32>, vector<96x128xf32>, vector<16x128xf32> -> vector<16x128xf32>
    %c0_14 = arith.constant 0 : index
    %c0_15 = arith.constant 0 : index
    %12 = vector.load %arg14[%c0_14, %c0_15] : memref<16x128xf32, #tpu.memory_space<vmem>>, vector<16x128xf32>
    tpu.vector_store %arg14[%c0_14, %c0_15], %11 {strides = array<i32>} : memref<16x128xf32, #tpu.memory_space<vmem>>, vector<16x128xf32>,
    %c0_16 = arith.constant 0 : index
    %c0_17 = arith.constant 0 : index
    %13 = vector.load %arg5[%c0_16, %c0_17] : memref<32x16xf32, #tpu.memory_space<vmem>>, vector<32x16xf32>
    %cst_18 = arith.constant dense<0.000000e+00> : vector<32x16xf32>
    %14 = tpu.matmul %13, %0, %cst_18 {dimension_numbers = #tpu.dot_dimension_numbers<[1], [0], [0], [1], [0, 0, 1, 1], [], []>} : vector<32x16xf32>, vector<16x16xf32>, vector<32x16xf32> -> vector<32x16xf32>
    %15 = tpu.concatenate %14, %1 in 1 : vector<32x16xf32>, vector<32x16xf32> -> vector<32x32xf32>
    %c0_19 = arith.constant 0 : index
    %c0_20 = arith.constant 0 : index
    %16 = vector.load %arg6[%c0_19, %c0_20] : memref<32x8xf32, #tpu.memory_space<vmem>>, vector<32x8xf32>
    %cst_21 = arith.constant dense<0.000000e+00> : vector<32x16xf32>
    %17 = tpu.matmul %16, %2, %cst_21 {dimension_numbers = #tpu.dot_dimension_numbers<[1], [0], [0], [1], [0, 0, 1, 1], [], []>} : vector<32x8xf32>, vector<8x16xf32>, vector<32x16xf32> -> vector<32x16xf32>
    %18 = tpu.concatenate %1, %17 in 1 : vector<32x16xf32>, vector<32x16xf32> -> vector<32x32xf32>
    %c0_22 = arith.constant 0 : index
    %c0_23 = arith.constant 0 : index
    %19 = vector.load %arg1[%c0_22, %c0_23] : memref<32x32xf32, #tpu.memory_space<vmem>>, vector<32x32xf32>
    %cst_24 = arith.constant dense<0.000000e+00> : vector<32x32xf32>
    %20 = tpu.matmul %19, %15, %cst_24 {dimension_numbers = #tpu.dot_dimension_numbers<[1], [0], [0], [1], [0, 0, 1, 1], [], []>} : vector<32x32xf32>, vector<32x32xf32>, vector<32x32xf32> -> vector<32x32xf32>
    %cst_25 = arith.constant dense<0.000000e+00> : vector<32x32xf32>
    %21 = tpu.matmul %19, %20, %cst_25 {dimension_numbers = #tpu.dot_dimension_numbers<[1], [0], [0], [1], [0, 0, 1, 1], [], []>} : vector<32x32xf32>, vector<32x32xf32>, vector<32x32xf32> -> vector<32x32xf32>
    %22 = tpu.concatenate %15, %20, %21 in 1 : vector<32x32xf32>, vector<32x32xf32>, vector<32x32xf32> -> vector<32x96xf32>
    %c0_26 = arith.constant 0 : index
    %c0_27 = arith.constant 0 : index
    %23 = vector.load %arg2[%c0_26, %c0_27] : memref<32x32xf32, #tpu.memory_space<vmem>>, vector<32x32xf32>
    %cst_28 = arith.constant dense<0.000000e+00> : vector<32x32xf32>
    %24 = tpu.matmul %23, %18, %cst_28 {dimension_numbers = #tpu.dot_dimension_numbers<[1], [0], [0], [1], [0, 0, 1, 1], [], []>} : vector<32x32xf32>, vector<32x32xf32>, vector<32x32xf32> -> vector<32x32xf32>
    %cst_29 = arith.constant dense<0.000000e+00> : vector<32x32xf32>
    %25 = tpu.matmul %23, %24, %cst_29 {dimension_numbers = #tpu.dot_dimension_numbers<[1], [0], [0], [1], [0, 0, 1, 1], [], []>} : vector<32x32xf32>, vector<32x32xf32>, vector<32x32xf32> -> vector<32x32xf32>
    %26 = tpu.concatenate %18, %24, %25 in 1 : vector<32x32xf32>, vector<32x32xf32>, vector<32x32xf32> -> vector<32x96xf32>
    %27 = tpu.concatenate %22, %26 in 1 : vector<32x96xf32>, vector<32x96xf32> -> vector<32x192xf32>
    %c0_30 = arith.constant 0 : index
    %c0_31 = arith.constant 0 : index
    %28 = vector.load %arg12[%c0_30, %c0_31] : memref<192x128xf32, #tpu.memory_space<vmem>>, vector<192x128xf32>
    %cst_32 = arith.constant dense<0.000000e+00> : vector<32x128xf32>
    %29 = tpu.matmul %27, %28, %cst_32 {dimension_numbers = #tpu.dot_dimension_numbers<[1], [0], [0], [1], [0, 0, 1, 1], [], []>} : vector<32x192xf32>, vector<192x128xf32>, vector<32x128xf32> -> vector<32x128xf32>
    %c0_33 = arith.constant 0 : index
    %c0_34 = arith.constant 0 : index
    %30 = vector.load %arg15[%c0_33, %c0_34] : memref<32x128xf32, #tpu.memory_space<vmem>>, vector<32x128xf32>
    tpu.vector_store %arg15[%c0_33, %c0_34], %29 {strides = array<i32>} : memref<32x128xf32, #tpu.memory_space<vmem>>, vector<32x128xf32>,
    %c0_35 = arith.constant 0 : index
    %c0_36 = arith.constant 0 : index
    %31 = vector.load %arg7[%c0_35, %c0_36] : memref<8x32xf32, #tpu.memory_space<vmem>>, vector<8x32xf32>
    %cst_37 = arith.constant dense<0.000000e+00> : vector<8x16xf32>
    %32 = tpu.matmul %31, %1, %cst_37 {dimension_numbers = #tpu.dot_dimension_numbers<[1], [0], [0], [1], [0, 0, 1, 1], [], []>} : vector<8x32xf32>, vector<32x16xf32>, vector<8x16xf32> -> vector<8x16xf32>
    %33 = tpu.concatenate %2, %32 in 1 : vector<8x16xf32>, vector<8x16xf32> -> vector<8x32xf32>
    %c0_38 = arith.constant 0 : index
    %c0_39 = arith.constant 0 : index
    %34 = vector.load %arg3[%c0_38, %c0_39] : memref<8x8xf32, #tpu.memory_space<vmem>>, vector<8x8xf32>
    %cst_40 = arith.constant dense<0.000000e+00> : vector<8x32xf32>
    %35 = tpu.matmul %34, %33, %cst_40 {dimension_numbers = #tpu.dot_dimension_numbers<[1], [0], [0], [1], [0, 0, 1, 1], [], []>} : vector<8x8xf32>, vector<8x32xf32>, vector<8x32xf32> -> vector<8x32xf32>
    %cst_41 = arith.constant dense<0.000000e+00> : vector<8x32xf32>
    %36 = tpu.matmul %34, %35, %cst_41 {dimension_numbers = #tpu.dot_dimension_numbers<[1], [0], [0], [1], [0, 0, 1, 1], [], []>} : vector<8x8xf32>, vector<8x32xf32>, vector<8x32xf32> -> vector<8x32xf32>
    %37 = tpu.concatenate %33, %35, %36 in 1 : vector<8x32xf32>, vector<8x32xf32>, vector<8x32xf32> -> vector<8x96xf32>
    %c0_42 = arith.constant 0 : index
    %c0_43 = arith.constant 0 : index
    %38 = vector.load %arg13[%c0_42, %c0_43] : memref<96x128xf32, #tpu.memory_space<vmem>>, vector<96x128xf32>
    %cst_44 = arith.constant dense<0.000000e+00> : vector<8x128xf32>
    %39 = tpu.matmul %37, %38, %cst_44 {dimension_numbers = #tpu.dot_dimension_numbers<[1], [0], [0], [1], [0, 0, 1, 1], [], []>} : vector<8x96xf32>, vector<96x128xf32>, vector<8x128xf32> -> vector<8x128xf32>
    %c0_45 = arith.constant 0 : index
    %c0_46 = arith.constant 0 : index
    %40 = vector.load %arg16[%c0_45, %c0_46] : memref<8x128xf32, #tpu.memory_space<vmem>>, vector<8x128xf32>
    tpu.vector_store %arg16[%c0_45, %c0_46], %39 {strides = array<i32>} : memref<8x128xf32, #tpu.memory_space<vmem>>, vector<8x128xf32>,
    return
  }
}

</mosaic_0001>

<llo_original>
// kernel: tpu_custom_call.1
$region0: #{tpu_custom_call.1}
  #allocation0 [shape = 'u32[]', space=smem, size = 0x4, offset = 0x4, fixed_abs, tag = 'smem constant byte address 0x4 - core index']
  #allocation1 [shape = 'u32[72,128]{1,0:T(1,128)}', space=vmem, size = 0x9000, scoped, tag = 'internal scratch']
  %s0 = inlined_call_operand.vmem [shape: f32[16,16], index: 0, kind: input, shape index: {}]
  %s1 = inlined_call_operand.vmem [shape: f32[32,32], index: 1, kind: input, shape index: {}]
  %s2 = inlined_call_operand.vmem [shape: f32[32,32], index: 2, kind: input, shape index: {}]
  %s3 = inlined_call_operand.hbm [shape: f32[8,8], index: 3, kind: input, shape index: {}]
  %s4 = inlined_call_operand.vmem [shape: f32[16,32], index: 4, kind: input, shape index: {}]
  %s5 = inlined_call_operand.vmem [shape: f32[32,16], index: 5, kind: input, shape index: {}]
  %s6 = inlined_call_operand.vmem [shape: f32[32,8], index: 6, kind: input, shape index: {}]
  %s7 = inlined_call_operand.hbm [shape: f32[8,32], index: 7, kind: input, shape index: {}]
  %s8 = inlined_call_operand.vmem [shape: f32[16,16], index: 8, kind: input, shape index: {}]
  %s9 = inlined_call_operand.vmem [shape: f32[32,16], index: 9, kind: input, shape index: {}]
  %s10 = inlined_call_operand.vmem [shape: f32[8,16], index: 10, kind: input, shape index: {}]
  %s11 = inlined_call_operand.hbm [shape: f32[96,128], index: 11, kind: input, shape index: {}]
  %s12 = inlined_call_operand.hbm [shape: f32[192,128], index: 12, kind: input, shape index: {}]
  %s13 = inlined_call_operand.hbm [shape: f32[96,128], index: 13, kind: input, shape index: {}]
  %s14 = inlined_call_operand.hbm [shape: f32[16,128], index: 14, kind: output, shape index: {0}]
  %s15 = inlined_call_operand.hbm [shape: f32[32,128], index: 15, kind: output, shape index: {1}]
  %s16 = inlined_call_operand.hbm [shape: f32[8,128], index: 16, kind: output, shape index: {2}]
  %17 = xla_tuple %s14, %s15, %s16
  %s18 = sld [smem:[#allocation0]]
  $region102: #{tpu_custom_call.1} parent=0
    _
  %s20 = ssub.s32 1, %s18
  %s21 = scalar_select 0, %s20, %s18
  $region1: #{tpu_custom_call.1} parent=0
    #allocation2 [shape = 'u8[4096]{0}', space=vmem, size = 0x1000, scoped, tag = 'input window, operand 3, single buffered']
    #allocation3 [shape = 's32[1]{0}', space=sflag, size = 0x4, scoped, tag = 'scoped memory for tpu_custom_call.1']
    #allocation4 [shape = 's32[1]{0}', space=sflag, size = 0x4, scoped, tag = 'scoped memory for tpu_custom_call.1']
    #allocation5 [shape = 'u8[4096]{0}', space=vmem, size = 0x1000, scoped, tag = 'input window, operand 7, single buffered']
    #allocation6 [shape = 's32[1]{0}', space=sflag, size = 0x4, scoped, tag = 'scoped memory for tpu_custom_call.1']
    #allocation7 [shape = 'u8[49152]{0}', space=vmem, size = 0xc000, scoped, tag = 'input window, operand 11, single buffered']
    #allocation8 [shape = 'u8[98304]{0}', space=vmem, size = 0x18000, scoped, tag = 'input window, operand 12, single buffered']
    #allocation9 [shape = 's32[1]{0}', space=sflag, size = 0x4, scoped, tag = 'scoped memory for tpu_custom_call.1']
    #allocation10 [shape = 'u8[49152]{0}', space=vmem, size = 0xc000, scoped, tag = 'input window, operand 13, single buffered']
    #allocation11 [shape = 'u8[8192]{0}', space=vmem, size = 0x2000, scoped, tag = 'output window, operand 0, single buffered']
    #allocation12 [shape = 'u8[16384]{0}', space=vmem, size = 0x4000, scoped, tag = 'output window, operand 1, single buffered']
    #allocation13 [shape = 's32[1]{0}', space=sflag, size = 0x4, scoped, tag = 'scoped memory for tpu_custom_call.1']
    #allocation14 [shape = 'u8[4096]{0}', space=vmem, size = 0x1000, scoped, tag = 'output window, operand 2, single buffered']
    %22 = vsyncpa [#allocation3], 0
    %23 = vsyncpa [#allocation6], 0
    %24 = vsyncpa [#allocation9], 0
    %25 = vsyncpa [#allocation4], 0
    %26 = vsyncpa [#allocation13], 0
    // Predicated region
    $region2: #{tpu_custom_call.1} parent=1 // pred_check
      _
    $region3: #{tpu_custom_call.1} parent=1 // pred_check_branch
      %28 = sbr.rel (0) target = $region5
    $region4: #{tpu_custom_call.1} parent=1 // pred_region
      _
    $region5: #{tpu_custom_call.1} parent=1 // pred_fallthru
      _
    // Predicated region
    $region6: #{tpu_custom_call.1} parent=1 // pred_check
      _
    $region7: #{tpu_custom_call.1} parent=1 // pred_check_branch
      %30 = sbr.rel (0) target = $region9
    $region8: #{tpu_custom_call.1} parent=1 // pred_region
      _
    $region9: #{tpu_custom_call.1} parent=1 // pred_fallthru
      _
    // Predicated region
    $region10: #{tpu_custom_call.1} parent=1 // pred_check
      _
    $region11: #{tpu_custom_call.1} parent=1 // pred_check_branch
      %32 = sbr.rel (0) target = $region13
    $region12: #{tpu_custom_call.1} parent=1 // pred_region
      _
    $region13: #{tpu_custom_call.1} parent=1 // pred_fallthru
      _
    // Predicated region
    $region14: #{tpu_custom_call.1} parent=1 // pred_check
      _
    $region15: #{tpu_custom_call.1} parent=1 // pred_check_branch
      %34 = sbr.rel (0) target = $region17
    $region16: #{tpu_custom_call.1} parent=1 // pred_region
      %36 = vsyncadd [#allocation3], 0
      %s38 = sshll.u32 %s3, 4
      %s39 = int_to_ptr.hbm [resolvable:$true] %s38
      %s40 = sshll.u32 [#allocation2], 4
      %s41 = int_to_ptr.vmem [resolvable:$true] %s40
      %43 = dma.hbm_to_vmem [thread:$0]  %s39, 128, %s41, [#allocation3]
    $region17: #{tpu_custom_call.1} parent=1 // pred_fallthru
      _
    // Predicated region
    $region18: #{tpu_custom_call.1} parent=1 // pred_check
      _
    $region19: #{tpu_custom_call.1} parent=1 // pred_check_branch
      %45 = sbr.rel (0) target = $region21
    $region20: #{tpu_custom_call.1} parent=1 // pred_region
      _
    $region21: #{tpu_custom_call.1} parent=1 // pred_fallthru
      _
    // Predicated region
    $region22: #{tpu_custom_call.1} parent=1 // pred_check
      _
    $region23: #{tpu_custom_call.1} parent=1 // pred_check_branch
      %47 = sbr.rel (0) target = $region25
    $region24: #{tpu_custom_call.1} parent=1 // pred_region
      _
    $region25: #{tpu_custom_call.1} parent=1 // pred_fallthru
      _
    // Predicated region
    $region26: #{tpu_custom_call.1} parent=1 // pred_check
      _
    $region27: #{tpu_custom_call.1} parent=1 // pred_check_branch
      %49 = sbr.rel (0) target = $region29
    $region28: #{tpu_custom_call.1} parent=1 // pred_region
      _
    $region29: #{tpu_custom_call.1} parent=1 // pred_fallthru
      _
    // Predicated region
    $region30: #{tpu_custom_call.1} parent=1 // pred_check
      _
    $region31: #{tpu_custom_call.1} parent=1 // pred_check_branch
      %51 = sbr.rel (0) target = $region33
    $region32: #{tpu_custom_call.1} parent=1 // pred_region
      %53 = vsyncadd [#allocation6], 0
      %s55 = sshll.u32 %s7, 4
      %s56 = int_to_ptr.hbm [resolvable:$true] %s55
      %s57 = sshll.u32 [#allocation5], 4
      %s58 = int_to_ptr.vmem [resolvable:$true] %s57
      %60 = dma.hbm_to_vmem [thread:$0]  %s56, 128, %s58, [#allocation6]
    $region33: #{tpu_custom_call.1} parent=1 // pred_fallthru
      _
    // Predicated region
    $region34: #{tpu_custom_call.1} parent=1 // pred_check
      _
    $region35: #{tpu_custom_call.1} parent=1 // pred_check_branch
      %62 = sbr.rel (0) target = $region37
    $region36: #{tpu_custom_call.1} parent=1 // pred_region
      _
    $region37: #{tpu_custom_call.1} parent=1 // pred_fallthru
      _
    // Predicated region
    $region38: #{tpu_custom_call.1} parent=1 // pred_check
      _
    $region39: #{tpu_custom_call.1} parent=1 // pred_check_branch
      %64 = sbr.rel (0) target = $region41
    $region40: #{tpu_custom_call.1} parent=1 // pred_region
      _
    $region41: #{tpu_custom_call.1} parent=1 // pred_fallthru
      _
    // Predicated region
    $region42: #{tpu_custom_call.1} parent=1 // pred_check
      _
    $region43: #{tpu_custom_call.1} parent=1 // pred_check_branch
      %66 = sbr.rel (0) target = $region45
    $region44: #{tpu_custom_call.1} parent=1 // pred_region
      _
    $region45: #{tpu_custom_call.1} parent=1 // pred_fallthru
      _
    // Predicated region
    $region46: #{tpu_custom_call.1} parent=1 // pred_check
      _
    $region47: #{tpu_custom_call.1} parent=1 // pred_check_branch
      %68 = sbr.rel (0) target = $region49
    $region48: #{tpu_custom_call.1} parent=1 // pred_region
      %70 = vsyncadd [#allocation6], 0
      %s71 = sshll.u32 %s11, 4
      %s72 = int_to_ptr.hbm [resolvable:$true] %s71
      %s73 = sshll.u32 [#allocation7], 4
      %s74 = int_to_ptr.vmem [resolvable:$true] %s73
      %79 = dma.hbm_to_vmem [thread:$0]  %s72, 1536, %s74, [#allocation6], 128, 128, 8
    $region49: #{tpu_custom_call.1} parent=1 // pred_fallthru
      _
    // Predicated region
    $region50: #{tpu_custom_call.1} parent=1 // pred_check
      _
    $region51: #{tpu_custom_call.1} parent=1 // pred_check_branch
      %81 = sbr.rel (0) target = $region53
    $region52: #{tpu_custom_call.1} parent=1 // pred_region
      %83 = vsyncadd [#allocation9], 0
      %s84 = sshll.u32 %s12, 4
      %s85 = int_to_ptr.hbm [resolvable:$true] %s84
      %s86 = sshll.u32 [#allocation8], 4
      %s87 = int_to_ptr.vmem [resolvable:$true] %s86
      %92 = dma.hbm_to_vmem [thread:$0]  %s85, 3072, %s87, [#allocation9], 128, 128, 8
    $region53: #{tpu_custom_call.1} parent=1 // pred_fallthru
      _
    // Predicated region
    $region54: #{tpu_custom_call.1} parent=1 // pred_check
      _
    $region55: #{tpu_custom_call.1} parent=1 // pred_check_branch
      %94 = sbr.rel (0) target = $region57
    $region56: #{tpu_custom_call.1} parent=1 // pred_region
      %96 = vsyncadd [#allocation9], 0
      %s97 = sshll.u32 %s13, 4
      %s98 = int_to_ptr.hbm [resolvable:$true] %s97
      %s99 = sshll.u32 [#allocation10], 4
      %s100 = int_to_ptr.vmem [resolvable:$true] %s99
      %105 = dma.hbm_to_vmem [thread:$0]  %s98, 1536, %s100, [#allocation9], 128, 128, 8
    $region57: #{tpu_custom_call.1} parent=1 // pred_fallthru
      _
    // Predicated region
    $region58: #{tpu_custom_call.1} parent=1 // pred_check
      _
    $region59: #{tpu_custom_call.1} parent=1 // pred_check_branch
      %107 = sbr.rel (0) target = $region61
    $region60: #{tpu_custom_call.1} parent=1 // pred_region
      %109 = dma.done [#allocation3], 128
    $region61: #{tpu_custom_call.1} parent=1 // pred_fallthru
      _
    // Predicated region
    $region62: #{tpu_custom_call.1} parent=1 // pred_check
      _
    $region63: #{tpu_custom_call.1} parent=1 // pred_check_branch
      %111 = sbr.rel (0) target = $region65
    $region64: #{tpu_custom_call.1} parent=1 // pred_region
      %113 = dma.done [#allocation6], 128
    $region65: #{tpu_custom_call.1} parent=1 // pred_fallthru
      _
    // Predicated region
    $region66: #{tpu_custom_call.1} parent=1 // pred_check
      _
    $region67: #{tpu_custom_call.1} parent=1 // pred_check_branch
      %115 = sbr.rel (0) target = $region69
    $region68: #{tpu_custom_call.1} parent=1 // pred_region
      %117 = dma.done [#allocation6], 1536
    $region69: #{tpu_custom_call.1} parent=1 // pred_fallthru
      _
    // Predicated region
    $region70: #{tpu_custom_call.1} parent=1 // pred_check
      _
    $region71: #{tpu_custom_call.1} parent=1 // pred_check_branch
      %119 = sbr.rel (0) target = $region73
    $region72: #{tpu_custom_call.1} parent=1 // pred_region
      %121 = dma.done [#allocation9], 3072
    $region73: #{tpu_custom_call.1} parent=1 // pred_fallthru
      _
    // Predicated region
    $region74: #{tpu_custom_call.1} parent=1 // pred_check
      _
    $region75: #{tpu_custom_call.1} parent=1 // pred_check_branch
      %123 = sbr.rel (0) target = $region77
    $region76: #{tpu_custom_call.1} parent=1 // pred_region
      %125 = dma.done [#allocation9], 1536
    $region77: #{tpu_custom_call.1} parent=1 // pred_fallthru
      _
    %v126 = vld [vmem:[%s8] sm:$0xff]
    %v127 = vld [vmem:[%s8 + $0x8] sm:$0xff]
    %v128 = vld [vmem:[%s9] sm:$0xff]
    %v129 = vld [vmem:[%s9 + $0x8] sm:$0xff]
    %v130 = vld [vmem:[%s9 + $0x10] sm:$0xff]
    %v131 = vld [vmem:[%s9 + $0x18] sm:$0xff]
    %v132 = vld [vmem:[%s10] sm:$0xff]
    %v133 = vld [vmem:[%s4] sm:$0xff]
    %v134 = vld [vmem:[%s4 + $0x8] sm:$0xff]
    %vm135 = vcmask 261120
    %v137 = vsel %vm135, %v133, 0
    %v140 = vsel %vm135, %v134, 0
    %142 = vmatpush.msra.mxu0 0.0
    %143 = vmatpush.msra.mxu0 0.0
    %144 = vmatpush.msra.mxu0 0.0
    %145 = vmatpush.msra.mxu0 0.0
    %146 = vmatpush.msra.mxu0 0.0
    %147 = vmatpush.msra.mxu0 0.0
    %148 = vmatpush.msra.mxu0 0.0
    %149 = vmatpush.msra.mxu0 0.0
    %150 = vmatpush.msra.mxu0 0.0
    %151 = vmatpush.msra.mxu0 0.0
    %152 = vmatpush.msra.mxu0 0.0
    %153 = vmatpush.msra.mxu0 0.0
    %154 = vmatpush.msra.mxu0 %v131
    %155 = vmatpush.msra.mxu0 %v130
    %156 = vmatpush.msra.mxu0 %v129
    %157 = vmatpush.msra.mxu0 %v128
    %158 = vmatmul.f32.gmra.mxu0 %v137
    %v159 = vpop.f32.mrf.mxu0
    %v160 = vadd.f32 0.0, %v159
    %161 = vmatmul.f32.gmra.mxu0 %v140
    %v162 = vpop.f32.mrf.mxu0
    %v163 = vadd.f32 0.0, %v162
    %164 = vdwg.mxu0
    %167 = vrot.lane.b32.xlu0 %v160, 16
    %v168 = vpop.permute.xlu0 %167
    %169 = vrot.lane.b32.xlu0 %v163, 16
    %v170 = vpop.permute.xlu0 %169
    %vm173 = vcmask 130048
    %v174 = vsel %vm173, %v126, %v168
    %v175 = vsel %vm173, %v127, %v170
    %v176 = vld [vmem:[%s0] sm:$0xff]
    %v177 = vld [vmem:[%s0 + $0x8] sm:$0xff]
    %v179 = vsel %vm173, %v176, 0
    %v182 = vsel %vm173, %v177, 0
    %184 = vmatpush.msra.mxu0 0.0
    %185 = vmatpush.msra.mxu0 0.0
    %186 = vmatpush.msra.mxu0 0.0
    %187 = vmatpush.msra.mxu0 0.0
    %188 = vmatpush.msra.mxu0 0.0
    %189 = vmatpush.msra.mxu0 0.0
    %190 = vmatpush.msra.mxu0 0.0
    %191 = vmatpush.msra.mxu0 0.0
    %192 = vmatpush.msra.mxu0 0.0
    %193 = vmatpush.msra.mxu0 0.0
    %194 = vmatpush.msra.mxu0 0.0
    %195 = vmatpush.msra.mxu0 0.0
    %196 = vmatpush.msra.mxu0 0.0
    %197 = vmatpush.msra.mxu0 0.0
    %198 = vmatpush.msra.mxu0 %v175
    %199 = vmatpush.msra.mxu0 %v174
    %200 = vmatmul.f32.gmra.mxu0 %v179
    %v201 = vpop.f32.mrf.mxu0
    %v202 = vadd.f32 0.0, %v201
    %203 = vmatmul.f32.gmra.mxu0 %v182
    %v204 = vpop.f32.mrf.mxu0
    %v205 = vadd.f32 0.0, %v204
    %206 = vdwg.mxu0
    %207 = vmatpush.msra.mxu0 0.0
    %208 = vmatpush.msra.mxu0 0.0
    %209 = vmatpush.msra.mxu0 0.0
    %210 = vmatpush.msra.mxu0 0.0
    %211 = vmatpush.msra.mxu0 0.0
    %212 = vmatpush.msra.mxu0 0.0
    %213 = vmatpush.msra.mxu0 0.0
    %214 = vmatpush.msra.mxu0 0.0
    %215 = vmatpush.msra.mxu0 0.0
    %216 = vmatpush.msra.mxu0 0.0
    %217 = vmatpush.msra.mxu0 0.0
    %218 = vmatpush.msra.mxu0 0.0
    %219 = vmatpush.msra.mxu0 0.0
    %220 = vmatpush.msra.mxu0 0.0
    %221 = vmatpush.msra.mxu0 %v205
    %222 = vmatpush.msra.mxu0 %v202
    %223 = vmatmul.f32.gmra.mxu0 %v179
    %v224 = vpop.f32.mrf.mxu0
    %v225 = vadd.f32 0.0, %v224
    %226 = vmatmul.f32.gmra.mxu0 %v182
    %v227 = vpop.f32.mrf.mxu0
    %v228 = vadd.f32 0.0, %v227
    %229 = vdwg.mxu0
    %232 = vrot.lane.b32.xlu0 %v202, 32
    %v233 = vpop.permute.xlu0 %232
    %234 = vrot.lane.b32.xlu0 %v205, 32
    %v235 = vpop.permute.xlu0 %234
    %240 = vrot.lane.b32.xlu0 %v225, 64
    %v241 = vpop.permute.xlu0 %240
    %242 = vrot.lane.b32.xlu0 %v228, 64
    %v243 = vpop.permute.xlu0 %242
    %v246 = vsel %vm135, %v174, %v233
    %v247 = vsel %vm135, %v175, %v235
    %vm248 = vcmask 523264
    %v249 = vsel %vm248, %v246, %v241
    %v250 = vsel %vm248, %v247, %v243
    %v251 = vld [vmem:[#allocation7] sm:$0xff]
    %v252 = vld [vmem:[#allocation7 + $0x8] sm:$0xff]
    %v253 = vld [vmem:[#allocation7 + $0x10] sm:$0xff]
    %v254 = vld [vmem:[#allocation7 + $0x18] sm:$0xff]
    %v255 = vld [vmem:[#allocation7 + $0x20] sm:$0xff]
    %v256 = vld [vmem:[#allocation7 + $0x28] sm:$0xff]
    %v257 = vld [vmem:[#allocation7 + $0x30] sm:$0xff]
    %v258 = vld [vmem:[#allocation7 + $0x38] sm:$0xff]
    %v259 = vld [vmem:[#allocation7 + $0x40] sm:$0xff]
    %v260 = vld [vmem:[#allocation7 + $0x48] sm:$0xff]
    %v261 = vld [vmem:[#allocation7 + $0x50] sm:$0xff]
    %v262 = vld [vmem:[#allocation7 + $0x58] sm:$0xff]
    %vm263 = vcmask 785408
    %v265 = vsel %vm263, %v249, 0
    %v268 = vsel %vm263, %v250, 0
    %270 = vmatpush.msra.mxu0 0.0
    %271 = vmatpush.msra.mxu0 0.0
    %272 = vmatpush.msra.mxu0 0.0
    %273 = vmatpush.msra.mxu0 0.0
    %274 = vmatpush.msra.mxu0 %v262
    %275 = vmatpush.msra.mxu0 %v261
    %276 = vmatpush.msra.mxu0 %v260
    %277 = vmatpush.msra.mxu0 %v259
    %278 = vmatpush.msra.mxu0 %v258
    %279 = vmatpush.msra.mxu0 %v257
    %280 = vmatpush.msra.mxu0 %v256
    %281 = vmatpush.msra.mxu0 %v255
    %282 = vmatpush.msra.mxu0 %v254
    %283 = vmatpush.msra.mxu0 %v253
    %284 = vmatpush.msra.mxu0 %v252
    %285 = vmatpush.msra.mxu0 %v251
    %286 = vmatmul.f32.gmra.mxu0 %v265
    %v287 = vpop.f32.mrf.mxu0
    %v288 = vadd.f32 0.0, %v287
    %289 = vmatmul.f32.gmra.mxu0 %v268
    %v290 = vpop.f32.mrf.mxu0
    %v291 = vadd.f32 0.0, %v290
    %292 = vdwg.mxu0
    %293 = vst [vmem:[#allocation11] sm:$0xff] %v288
    %294 = vst [vmem:[#allocation11 + $0x8] sm:$0xff] %v291
    %v295 = vld [vmem:[%s5] sm:$0xff]
    %v296 = vld [vmem:[%s5 + $0x8] sm:$0xff]
    %v297 = vld [vmem:[%s5 + $0x10] sm:$0xff]
    %v298 = vld [vmem:[%s5 + $0x18] sm:$0xff]
    %v300 = vsel %vm173, %v295, 0
    %v303 = vsel %vm173, %v296, 0
    %v306 = vsel %vm173, %v297, 0
    %v309 = vsel %vm173, %v298, 0
    %311 = vmatpush.msra.mxu0 0.0
    %312 = vmatpush.msra.mxu0 0.0
    %313 = vmatpush.msra.mxu0 0.0
    %314 = vmatpush.msra.mxu0 0.0
    %315 = vmatpush.msra.mxu0 0.0
    %316 = vmatpush.msra.mxu0 0.0
    %317 = vmatpush.msra.mxu0 0.0
    %318 = vmatpush.msra.mxu0 0.0
    %319 = vmatpush.msra.mxu0 0.0
    %320 = vmatpush.msra.mxu0 0.0
    %321 = vmatpush.msra.mxu0 0.0
    %322 = vmatpush.msra.mxu0 0.0
    %323 = vmatpush.msra.mxu0 0.0
    %324 = vmatpush.msra.mxu0 0.0
    %325 = vmatpush.msra.mxu0 %v127
    %326 = vmatpush.msra.mxu0 %v126
    %327 = vmatmul.f32.gmra.mxu0 %v300
    %v328 = vpop.f32.mrf.mxu0
    %v329 = vadd.f32 0.0, %v328
    %330 = vmatmul.f32.gmra.mxu0 %v303
    %v331 = vpop.f32.mrf.mxu0
    %v332 = vadd.f32 0.0, %v331
    %333 = vmatmul.f32.gmra.mxu0 %v306
    %v334 = vpop.f32.mrf.mxu0
    %v335 = vadd.f32 0.0, %v334
    %336 = vmatmul.f32.gmra.mxu0 %v309
    %v337 = vpop.f32.mrf.mxu0
    %v338 = vadd.f32 0.0, %v337
    %339 = vdwg.mxu0
    %344 = vrot.lane.b32.xlu0 %v128, 16
    %v345 = vpop.permute.xlu0 %344
    %346 = vrot.lane.b32.xlu0 %v129, 16
    %v347 = vpop.permute.xlu0 %346
    %348 = vrot.lane.b32.xlu0 %v130, 16
    %v349 = vpop.permute.xlu0 %348
    %350 = vrot.lane.b32.xlu0 %v131, 16
    %v351 = vpop.permute.xlu0 %350
    %v356 = vsel %vm173, %v329, %v345
    %v357 = vsel %vm173, %v332, %v347
    %v358 = vsel %vm173, %v335, %v349
    %v359 = vsel %vm173, %v338, %v351
    %v360 = vld [vmem:[%s6] sm:$0xff]
    %v361 = vld [vmem:[%s6 + $0x8] sm:$0xff]
    %v362 = vld [vmem:[%s6 + $0x10] sm:$0xff]
    %v363 = vld [vmem:[%s6 + $0x18] sm:$0xff]
    %vm364 = vcmask 64512
    %v366 = vsel %vm364, %v360, 0
    %v369 = vsel %vm364, %v361, 0
    %v372 = vsel %vm364, %v362, 0
    %v375 = vsel %vm364, %v363, 0
    %377 = vmatpush.msra.mxu0 0.0
    %378 = vmatpush.msra.mxu0 0.0
    %379 = vmatpush.msra.mxu0 0.0
    %380 = vmatpush.msra.mxu0 0.0
    %381 = vmatpush.msra.mxu0 0.0
    %382 = vmatpush.msra.mxu0 0.0
    %383 = vmatpush.msra.mxu0 0.0
    %384 = vmatpush.msra.mxu0 0.0
    %385 = vmatpush.msra.mxu0 0.0
    %386 = vmatpush.msra.mxu0 0.0
    %387 = vmatpush.msra.mxu0 0.0
    %388 = vmatpush.msra.mxu0 0.0
    %389 = vmatpush.msra.mxu0 0.0
    %390 = vmatpush.msra.mxu0 0.0
    %391 = vmatpush.msra.mxu0 0.0
    %392 = vmatpush.msra.mxu0 %v132
    %393 = vmatmul.f32.gmra.mxu0 %v366
    %v394 = vpop.f32.mrf.mxu0
    %v395 = vadd.f32 0.0, %v394
    %396 = vmatmul.f32.gmra.mxu0 %v369
    %v397 = vpop.f32.mrf.mxu0
    %v398 = vadd.f32 0.0, %v397
    %399 = vmatmul.f32.gmra.mxu0 %v372
    %v400 = vpop.f32.mrf.mxu0
    %v401 = vadd.f32 0.0, %v400
    %402 = vmatmul.f32.gmra.mxu0 %v375
    %v403 = vpop.f32.mrf.mxu0
    %v404 = vadd.f32 0.0, %v403
    %405 = vdwg.mxu0
    %410 = vrot.lane.b32.xlu0 %v395, 16
    %v411 = vpop.permute.xlu0 %410
    %412 = vrot.lane.b32.xlu0 %v398, 16
    %v413 = vpop.permute.xlu0 %412
    %414 = vrot.lane.b32.xlu0 %v401, 16
    %v415 = vpop.permute.xlu0 %414
    %416 = vrot.lane.b32.xlu0 %v404, 16
    %v417 = vpop.permute.xlu0 %416
    %v422 = vsel %vm173, %v128, %v411
    %v423 = vsel %vm173, %v129, %v413
    %v424 = vsel %vm173, %v130, %v415
    %v425 = vsel %vm173, %v131, %v417
    %v426 = vld [vmem:[%s1] sm:$0xff]
    %v427 = vld [vmem:[%s1 + $0x8] sm:$0xff]
    %v428 = vld [vmem:[%s1 + $0x10] sm:$0xff]
    %v429 = vld [vmem:[%s1 + $0x18] sm:$0xff]
    %v431 = vsel %vm135, %v426, 0
    %v434 = vsel %vm135, %v427, 0
    %v437 = vsel %vm135, %v428, 0
    %v440 = vsel %vm135, %v429, 0
    %442 = vmatpush.msra.mxu0 0.0
    %443 = vmatpush.msra.mxu0 0.0
    %444 = vmatpush.msra.mxu0 0.0
    %445 = vmatpush.msra.mxu0 0.0
    %446 = vmatpush.msra.mxu0 0.0
    %447 = vmatpush.msra.mxu0 0.0
    %448 = vmatpush.msra.mxu0 0.0
    %449 = vmatpush.msra.mxu0 0.0
    %450 = vmatpush.msra.mxu0 0.0
    %451 = vmatpush.msra.mxu0 0.0
    %452 = vmatpush.msra.mxu0 0.0
    %453 = vmatpush.msra.mxu0 0.0
    %454 = vmatpush.msra.mxu0 %v359
    %455 = vmatpush.msra.mxu0 %v358
    %456 = vmatpush.msra.mxu0 %v357
    %457 = vmatpush.msra.mxu0 %v356
    %458 = vmatmul.f32.gmra.mxu0 %v431
    %v459 = vpop.f32.mrf.mxu0
    %v460 = vadd.f32 0.0, %v459
    %461 = vmatmul.f32.gmra.mxu0 %v434
    %v462 = vpop.f32.mrf.mxu0
    %v463 = vadd.f32 0.0, %v462
    %464 = vmatmul.f32.gmra.mxu0 %v437
    %v465 = vpop.f32.mrf.mxu0
    %v466 = vadd.f32 0.0, %v465
    %467 = vmatmul.f32.gmra.mxu0 %v440
    %v468 = vpop.f32.mrf.mxu0
    %v469 = vadd.f32 0.0, %v468
    %470 = vdwg.mxu0
    %471 = vmatpush.msra.mxu0 0.0
    %472 = vmatpush.msra.mxu0 0.0
    %473 = vmatpush.msra.mxu0 0.0
    %474 = vmatpush.msra.mxu0 0.0
    %475 = vmatpush.msra.mxu0 0.0
    %476 = vmatpush.msra.mxu0 0.0
    %477 = vmatpush.msra.mxu0 0.0
    %478 = vmatpush.msra.mxu0 0.0
    %479 = vmatpush.msra.mxu0 0.0
    %480 = vmatpush.msra.mxu0 0.0
    %481 = vmatpush.msra.mxu0 0.0
    %482 = vmatpush.msra.mxu0 0.0
    %483 = vmatpush.msra.mxu0 %v469
    %484 = vmatpush.msra.mxu0 %v466
    %485 = vmatpush.msra.mxu0 %v463
    %486 = vmatpush.msra.mxu0 %v460
    %487 = vmatmul.f32.gmra.mxu0 %v431
    %v488 = vpop.f32.mrf.mxu0
    %v489 = vadd.f32 0.0, %v488
    %490 = vmatmul.f32.gmra.mxu0 %v434
    %v491 = vpop.f32.mrf.mxu0
    %v492 = vadd.f32 0.0, %v491
    %493 = vmatmul.f32.gmra.mxu0 %v437
    %v494 = vpop.f32.mrf.mxu0
    %v495 = vadd.f32 0.0, %v494
    %496 = vmatmul.f32.gmra.mxu0 %v440
    %v497 = vpop.f32.mrf.mxu0
    %v498 = vadd.f32 0.0, %v497
    %499 = vdwg.mxu0
    %504 = vrot.lane.b32.xlu0 %v460, 32
    %v505 = vpop.permute.xlu0 %504
    %506 = vrot.lane.b32.xlu0 %v463, 32
    %v507 = vpop.permute.xlu0 %506
    %508 = vrot.lane.b32.xlu0 %v466, 32
    %v509 = vpop.permute.xlu0 %508
    %510 = vrot.lane.b32.xlu0 %v469, 32
    %v511 = vpop.permute.xlu0 %510
    %520 = vrot.lane.b32.xlu0 %v489, 64
    %v521 = vpop.permute.xlu0 %520
    %522 = vrot.lane.b32.xlu0 %v492, 64
    %v523 = vpop.permute.xlu0 %522
    %524 = vrot.lane.b32.xlu0 %v495, 64
    %v525 = vpop.permute.xlu0 %524
    %526 = vrot.lane.b32.xlu0 %v498, 64
    %v527 = vpop.permute.xlu0 %526
    %v532 = vsel %vm135, %v356, %v505
    %v533 = vsel %vm135, %v357, %v507
    %v534 = vsel %vm135, %v358, %v509
    %v535 = vsel %vm135, %v359, %v511
    %v536 = vsel %vm248, %v532, %v521
    %v537 = vsel %vm248, %v533, %v523
    %v538 = vsel %vm248, %v534, %v525
    %v539 = vsel %vm248, %v535, %v527
    %v540 = vld [vmem:[%s2] sm:$0xff]
    %v541 = vld [vmem:[%s2 + $0x8] sm:$0xff]
    %v542 = vld [vmem:[%s2 + $0x10] sm:$0xff]
    %v543 = vld [vmem:[%s2 + $0x18] sm:$0xff]
    %v545 = vsel %vm135, %v540, 0
    %v548 = vsel %vm135, %v541, 0
    %v551 = vsel %vm135, %v542, 0
    %v554 = vsel %vm135, %v543, 0
    %556 = vmatpush.msra.mxu0 0.0
    %557 = vmatpush.msra.mxu0 0.0
    %558 = vmatpush.msra.mxu0 0.0
    %559 = vmatpush.msra.mxu0 0.0
    %560 = vmatpush.msra.mxu0 0.0
    %561 = vmatpush.msra.mxu0 0.0
    %562 = vmatpush.msra.mxu0 0.0
    %563 = vmatpush.msra.mxu0 0.0
    %564 = vmatpush.msra.mxu0 0.0
    %565 = vmatpush.msra.mxu0 0.0
    %566 = vmatpush.msra.mxu0 0.0
    %567 = vmatpush.msra.mxu0 0.0
    %568 = vmatpush.msra.mxu0 %v425
    %569 = vmatpush.msra.mxu0 %v424
    %570 = vmatpush.msra.mxu0 %v423
    %571 = vmatpush.msra.mxu0 %v422
    %572 = vmatmul.f32.gmra.mxu0 %v545
    %v573 = vpop.f32.mrf.mxu0
    %v574 = vadd.f32 0.0, %v573
    %575 = vmatmul.f32.gmra.mxu0 %v548
    %v576 = vpop.f32.mrf.mxu0
    %v577 = vadd.f32 0.0, %v576
    %578 = vmatmul.f32.gmra.mxu0 %v551
    %v579 = vpop.f32.mrf.mxu0
    %v580 = vadd.f32 0.0, %v579
    %581 = vmatmul.f32.gmra.mxu0 %v554
    %v582 = vpop.f32.mrf.mxu0
    %v583 = vadd.f32 0.0, %v582
    %584 = vdwg.mxu0
    %585 = vmatpush.msra.mxu0 0.0
    %586 = vmatpush.msra.mxu0 0.0
    %587 = vmatpush.msra.mxu0 0.0
    %588 = vmatpush.msra.mxu0 0.0
    %589 = vmatpush.msra.mxu0 0.0
    %590 = vmatpush.msra.mxu0 0.0
    %591 = vmatpush.msra.mxu0 0.0
    %592 = vmatpush.msra.mxu0 0.0
    %593 = vmatpush.msra.mxu0 0.0
    %594 = vmatpush.msra.mxu0 0.0
    %595 = vmatpush.msra.mxu0 0.0
    %596 = vmatpush.msra.mxu0 0.0
    %597 = vmatpush.msra.mxu0 %v583
    %598 = vmatpush.msra.mxu0 %v580
    %599 = vmatpush.msra.mxu0 %v577
    %600 = vmatpush.msra.mxu0 %v574
    %601 = vmatmul.f32.gmra.mxu0 %v545
    %v602 = vpop.f32.mrf.mxu0
    %v603 = vadd.f32 0.0, %v602
    %604 = vmatmul.f32.gmra.mxu0 %v548
    %v605 = vpop.f32.mrf.mxu0
    %v606 = vadd.f32 0.0, %v605
    %607 = vmatmul.f32.gmra.mxu0 %v551
    %v608 = vpop.f32.mrf.mxu0
    %v609 = vadd.f32 0.0, %v608
    %610 = vmatmul.f32.gmra.mxu0 %v554
    %v611 = vpop.f32.mrf.mxu0
    %v612 = vadd.f32 0.0, %v611
    %613 = vdwg.mxu0
    %618 = vrot.lane.b32.xlu0 %v574, 32
    %v619 = vpop.permute.xlu0 %618
    %620 = vrot.lane.b32.xlu0 %v577, 32
    %v621 = vpop.permute.xlu0 %620
    %622 = vrot.lane.b32.xlu0 %v580, 32
    %v623 = vpop.permute.xlu0 %622
    %624 = vrot.lane.b32.xlu0 %v583, 32
    %v625 = vpop.permute.xlu0 %624
    %634 = vrot.lane.b32.xlu0 %v603, 64
    %v635 = vpop.permute.xlu0 %634
    %636 = vrot.lane.b32.xlu0 %v606, 64
    %v637 = vpop.permute.xlu0 %636
    %638 = vrot.lane.b32.xlu0 %v609, 64
    %v639 = vpop.permute.xlu0 %638
    %640 = vrot.lane.b32.xlu0 %v612, 64
    %v641 = vpop.permute.xlu0 %640
    %v646 = vsel %vm135, %v422, %v619
    %v647 = vsel %vm135, %v423, %v621
    %v648 = vsel %vm135, %v424, %v623
    %v649 = vsel %vm135, %v425, %v625
    %v650 = vsel %vm248, %v646, %v635
    %v651 = vsel %vm248, %v647, %v637
    %v652 = vsel %vm248, %v648, %v639
    %v653 = vsel %vm248, %v649, %v641
    %658 = vrot.lane.b32.xlu0 %v650, 96
    %v659 = vpop.permute.xlu0 %658
    %660 = vrot.lane.b32.xlu0 %v651, 96
    %v661 = vpop.permute.xlu0 %660
    %662 = vrot.lane.b32.xlu0 %v652, 96
    %v663 = vpop.permute.xlu0 %662
    %664 = vrot.lane.b32.xlu0 %v653, 96
    %v665 = vpop.permute.xlu0 %664
    %v670 = vsel %vm263, %v536, %v659
    %v671 = vsel %vm263, %v537, %v661
    %v672 = vsel %vm263, %v538, %v663
    %v673 = vsel %vm263, %v539, %v665
    %v674 = vld [vmem:[#allocation8] sm:$0xff]
    %v675 = vld [vmem:[#allocation8 + $0x8] sm:$0xff]
    %v676 = vld [vmem:[#allocation8 + $0x10] sm:$0xff]
    %v677 = vld [vmem:[#allocation8 + $0x18] sm:$0xff]
    %v678 = vld [vmem:[#allocation8 + $0x20] sm:$0xff]
    %v679 = vld [vmem:[#allocation8 + $0x28] sm:$0xff]
    %v680 = vld [vmem:[#allocation8 + $0x30] sm:$0xff]
    %v681 = vld [vmem:[#allocation8 + $0x38] sm:$0xff]
    %v682 = vld [vmem:[#allocation8 + $0x40] sm:$0xff]
    %v683 = vld [vmem:[#allocation8 + $0x48] sm:$0xff]
    %v684 = vld [vmem:[#allocation8 + $0x50] sm:$0xff]
    %v685 = vld [vmem:[#allocation8 + $0x58] sm:$0xff]
    %v686 = vld [vmem:[#allocation8 + $0x60] sm:$0xff]
    %v687 = vld [vmem:[#allocation8 + $0x68] sm:$0xff]
    %v688 = vld [vmem:[#allocation8 + $0x70] sm:$0xff]
    %v689 = vld [vmem:[#allocation8 + $0x78] sm:$0xff]
    %v690 = vld [vmem:[#allocation8 + $0x80] sm:$0xff]
    %v691 = vld [vmem:[#allocation8 + $0x88] sm:$0xff]
    %v692 = vld [vmem:[#allocation8 + $0x90] sm:$0xff]
    %v693 = vld [vmem:[#allocation8 + $0x98] sm:$0xff]
    %v694 = vld [vmem:[#allocation8 + $0xa0] sm:$0xff]
    %v695 = vld [vmem:[#allocation8 + $0xa8] sm:$0xff]
    %v696 = vld [vmem:[#allocation8 + $0xb0] sm:$0xff]
    %v697 = vld [vmem:[#allocation8 + $0xb8] sm:$0xff]
    %v698 = vsel %vm248, %v659, 0
    %v700 = vsel %vm248, %v661, 0
    %v702 = vsel %vm248, %v663, 0
    %v704 = vsel %vm248, %v665, 0
    %706 = vmatpush.msra.mxu0 %v689
    %707 = vmatpush.msra.mxu0 %v688
    %708 = vmatpush.msra.mxu0 %v687
    %709 = vmatpush.msra.mxu0 %v686
    %710 = vmatpush.msra.mxu0 %v685
    %711 = vmatpush.msra.mxu0 %v684
    %712 = vmatpush.msra.mxu0 %v683
    %713 = vmatpush.msra.mxu0 %v682
    %714 = vmatpush.msra.mxu0 %v681
    %715 = vmatpush.msra.mxu0 %v680
    %716 = vmatpush.msra.mxu0 %v679
    %717 = vmatpush.msra.mxu0 %v678
    %718 = vmatpush.msra.mxu0 %v677
    %719 = vmatpush.msra.mxu0 %v676
    %720 = vmatpush.msra.mxu0 %v675
    %721 = vmatpush.msra.mxu0 %v674
    %722 = vmatmul.f32.gmra.mxu0 %v670
    %v723 = vpop.f32.mrf.mxu0
    %v724 = vadd.f32 0.0, %v723
    %725 = vmatmul.f32.gmra.mxu0 %v671
    %v726 = vpop.f32.mrf.mxu0
    %v727 = vadd.f32 0.0, %v726
    %728 = vmatmul.f32.gmra.mxu0 %v672
    %v729 = vpop.f32.mrf.mxu0
    %v730 = vadd.f32 0.0, %v729
    %731 = vmatmul.f32.gmra.mxu0 %v673
    %v732 = vpop.f32.mrf.mxu0
    %v733 = vadd.f32 0.0, %v732
    %734 = vdwg.mxu0
    %735 = vmatpush.msra.mxu0 0.0
    %736 = vmatpush.msra.mxu0 0.0
    %737 = vmatpush.msra.mxu0 0.0
    %738 = vmatpush.msra.mxu0 0.0
    %739 = vmatpush.msra.mxu0 0.0
    %740 = vmatpush.msra.mxu0 0.0
    %741 = vmatpush.msra.mxu0 0.0
    %742 = vmatpush.msra.mxu0 0.0
    %743 = vmatpush.msra.mxu0 %v697
    %744 = vmatpush.msra.mxu0 %v696
    %745 = vmatpush.msra.mxu0 %v695
    %746 = vmatpush.msra.mxu0 %v694
    %747 = vmatpush.msra.mxu0 %v693
    %748 = vmatpush.msra.mxu0 %v692
    %749 = vmatpush.msra.mxu0 %v691
    %750 = vmatpush.msra.mxu0 %v690
    %751 = vmatmul.f32.gmra.mxu0 %v698
    %v752 = vpop.f32.mrf.mxu0
    %v753 = vadd.f32 %v724, %v752
    %754 = vmatmul.f32.gmra.mxu0 %v700
    %v755 = vpop.f32.mrf.mxu0
    %v756 = vadd.f32 %v727, %v755
    %757 = vmatmul.f32.gmra.mxu0 %v702
    %v758 = vpop.f32.mrf.mxu0
    %v759 = vadd.f32 %v730, %v758
    %760 = vmatmul.f32.gmra.mxu0 %v704
    %v761 = vpop.f32.mrf.mxu0
    %v762 = vadd.f32 %v733, %v761
    %763 = vdwg.mxu0
    %764 = vst [vmem:[#allocation12] sm:$0xff] %v753
    %765 = vst [vmem:[#allocation12 + $0x8] sm:$0xff] %v756
    %766 = vst [vmem:[#allocation12 + $0x10] sm:$0xff] %v759
    %767 = vst [vmem:[#allocation12 + $0x18] sm:$0xff] %v762
    %v768 = vld [vmem:[#allocation5] sm:$0xff]
    %v770 = vsel %vm135, %v768, 0
    %772 = vmatpush.msra.mxu0 0.0
    %773 = vmatpush.msra.mxu0 0.0
    %774 = vmatpush.msra.mxu0 0.0
    %775 = vmatpush.msra.mxu0 0.0
    %776 = vmatpush.msra.mxu0 0.0
    %777 = vmatpush.msra.mxu0 0.0
    %778 = vmatpush.msra.mxu0 0.0
    %779 = vmatpush.msra.mxu0 0.0
    %780 = vmatpush.msra.mxu0 0.0
    %781 = vmatpush.msra.mxu0 0.0
    %782 = vmatpush.msra.mxu0 0.0
    %783 = vmatpush.msra.mxu0 0.0
    %784 = vmatpush.msra.mxu0 %v131
    %785 = vmatpush.msra.mxu0 %v130
    %786 = vmatpush.msra.mxu0 %v129
    %787 = vmatpush.msra.mxu0 %v128
    %788 = vmatmul.f32.gmra.mxu0 %v770
    %v789 = vpop.f32.mrf.mxu0
    %v790 = vadd.f32 0.0, %v789
    %791 = vdwg.mxu0
    %793 = vrot.lane.b32.xlu0 %v790, 16
    %v794 = vpop.permute.xlu0 %793
    %v796 = vsel %vm173, %v132, %v794
    %v797 = vld [vmem:[#allocation2] sm:$0xff]
    %v799 = vsel %vm364, %v797, 0
    %801 = vmatpush.msra.mxu0 0.0
    %802 = vmatpush.msra.mxu0 0.0
    %803 = vmatpush.msra.mxu0 0.0
    %804 = vmatpush.msra.mxu0 0.0
    %805 = vmatpush.msra.mxu0 0.0
    %806 = vmatpush.msra.mxu0 0.0
    %807 = vmatpush.msra.mxu0 0.0
    %808 = vmatpush.msra.mxu0 0.0
    %809 = vmatpush.msra.mxu0 0.0
    %810 = vmatpush.msra.mxu0 0.0
    %811 = vmatpush.msra.mxu0 0.0
    %812 = vmatpush.msra.mxu0 0.0
    %813 = vmatpush.msra.mxu0 0.0
    %814 = vmatpush.msra.mxu0 0.0
    %815 = vmatpush.msra.mxu0 0.0
    %816 = vmatpush.msra.mxu0 %v796
    %817 = vmatmul.f32.gmra.mxu0 %v799
    %v818 = vpop.f32.mrf.mxu0
    %v819 = vadd.f32 0.0, %v818
    %820 = vdwg.mxu0
    %821 = vmatpush.msra.mxu0 0.0
    %822 = vmatpush.msra.mxu0 0.0
    %823 = vmatpush.msra.mxu0 0.0
    %824 = vmatpush.msra.mxu0 0.0
    %825 = vmatpush.msra.mxu0 0.0
    %826 = vmatpush.msra.mxu0 0.0
    %827 = vmatpush.msra.mxu0 0.0
    %828 = vmatpush.msra.mxu0 0.0
    %829 = vmatpush.msra.mxu0 0.0
    %830 = vmatpush.msra.mxu0 0.0
    %831 = vmatpush.msra.mxu0 0.0
    %832 = vmatpush.msra.mxu0 0.0
    %833 = vmatpush.msra.mxu0 0.0
    %834 = vmatpush.msra.mxu0 0.0
    %835 = vmatpush.msra.mxu0 0.0
    %836 = vmatpush.msra.mxu0 %v819
    %837 = vmatmul.f32.gmra.mxu0 %v799
    %v838 = vpop.f32.mrf.mxu0
    %v839 = vadd.f32 0.0, %v838
    %840 = vdwg.mxu0
    %842 = vrot.lane.b32.xlu0 %v819, 32
    %v843 = vpop.permute.xlu0 %842
    %846 = vrot.lane.b32.xlu0 %v839, 64
    %v847 = vpop.permute.xlu0 %846
    %v849 = vsel %vm135, %v796, %v843
    %v850 = vsel %vm248, %v849, %v847
    %v851 = vld [vmem:[#allocation10] sm:$0xff]
    %v852 = vld [vmem:[#allocation10 + $0x8] sm:$0xff]
    %v853 = vld [vmem:[#allocation10 + $0x10] sm:$0xff]
    %v854 = vld [vmem:[#allocation10 + $0x18] sm:$0xff]
    %v855 = vld [vmem:[#allocation10 + $0x20] sm:$0xff]
    %v856 = vld [vmem:[#allocation10 + $0x28] sm:$0xff]
    %v857 = vld [vmem:[#allocation10 + $0x30] sm:$0xff]
    %v858 = vld [vmem:[#allocation10 + $0x38] sm:$0xff]
    %v859 = vld [vmem:[#allocation10 + $0x40] sm:$0xff]
    %v860 = vld [vmem:[#allocation10 + $0x48] sm:$0xff]
    %v861 = vld [vmem:[#allocation10 + $0x50] sm:$0xff]
    %v862 = vld [vmem:[#allocation10 + $0x58] sm:$0xff]
    %v864 = vsel %vm263, %v850, 0
    %866 = vmatpush.msra.mxu0 0.0
    %867 = vmatpush.msra.mxu0 0.0
    %868 = vmatpush.msra.mxu0 0.0
    %869 = vmatpush.msra.mxu0 0.0
    %870 = vmatpush.msra.mxu0 %v862
    %871 = vmatpush.msra.mxu0 %v861
    %872 = vmatpush.msra.mxu0 %v860
    %873 = vmatpush.msra.mxu0 %v859
    %874 = vmatpush.msra.mxu0 %v858
    %875 = vmatpush.msra.mxu0 %v857
    %876 = vmatpush.msra.mxu0 %v856
    %877 = vmatpush.msra.mxu0 %v855
    %878 = vmatpush.msra.mxu0 %v854
    %879 = vmatpush.msra.mxu0 %v853
    %880 = vmatpush.msra.mxu0 %v852
    %881 = vmatpush.msra.mxu0 %v851
    %882 = vmatmul.f32.gmra.mxu0 %v864
    %v883 = vpop.f32.mrf.mxu0
    %v884 = vadd.f32 0.0, %v883
    %885 = vdwg.mxu0
    %886 = vst [vmem:[#allocation14] sm:$0xff] %v884
    // Predicated region
    $region78: #{tpu_custom_call.1} parent=1 // pred_check
      _
    $region79: #{tpu_custom_call.1} parent=1 // pred_check_branch
      %888 = sbr.rel (0) target = $region81
    $region80: #{tpu_custom_call.1} parent=1 // pred_region
      %890 = vsyncadd [#allocation4], 0
      %s891 = sshll.u32 [#allocation11], 4
      %s892 = int_to_ptr.vmem [resolvable:$true] %s891
      %s893 = sshll.u32 %s14, 4
      %s894 = int_to_ptr.hbm [resolvable:$true] %s893
      %899 = dma.vmem_to_hbm [thread:$0]  %s892, 256, %s894, [#allocation4], 128, 128, 8
    $region81: #{tpu_custom_call.1} parent=1 // pred_fallthru
      _
    // Predicated region
    $region82: #{tpu_custom_call.1} parent=1 // pred_check
      _
    $region83: #{tpu_custom_call.1} parent=1 // pred_check_branch
      %901 = sbr.rel (0) target = $region85
    $region84: #{tpu_custom_call.1} parent=1 // pred_region
      %903 = vsyncadd [#allocation13], 0
      %s904 = sshll.u32 [#allocation12], 4
      %s905 = int_to_ptr.vmem [resolvable:$true] %s904
      %s906 = sshll.u32 %s15, 4
      %s907 = int_to_ptr.hbm [resolvable:$true] %s906
      %912 = dma.vmem_to_hbm [thread:$0]  %s905, 512, %s907, [#allocation13], 128, 128, 8
    $region85: #{tpu_custom_call.1} parent=1 // pred_fallthru
      _
    // Predicated region
    $region86: #{tpu_custom_call.1} parent=1 // pred_check
      _
    $region87: #{tpu_custom_call.1} parent=1 // pred_check_branch
      %914 = sbr.rel (0) target = $region89
    $region88: #{tpu_custom_call.1} parent=1 // pred_region
      %916 = vsyncadd [#allocation13], 0
      %s918 = sshll.u32 [#allocation14], 4
      %s919 = int_to_ptr.vmem [resolvable:$true] %s918
      %s920 = sshll.u32 %s16, 4
      %s921 = int_to_ptr.hbm [resolvable:$true] %s920
      %923 = dma.vmem_to_hbm [thread:$0]  %s919, 128, %s921, [#allocation13]
    $region89: #{tpu_custom_call.1} parent=1 // pred_fallthru
      _
    // Predicated region
    $region90: #{tpu_custom_call.1} parent=1 // pred_check
      _
    $region91: #{tpu_custom_call.1} parent=1 // pred_check_branch
      %925 = sbr.rel (0) target = $region93
    $region92: #{tpu_custom_call.1} parent=1 // pred_region
      %927 = dma.done [#allocation4], 256
    $region93: #{tpu_custom_call.1} parent=1 // pred_fallthru
      _
    // Predicated region
    $region94: #{tpu_custom_call.1} parent=1 // pred_check
      _
    $region95: #{tpu_custom_call.1} parent=1 // pred_check_branch
      %929 = sbr.rel (0) target = $region97
    $region96: #{tpu_custom_call.1} parent=1 // pred_region
      %931 = dma.done [#allocation13], 512
    $region97: #{tpu_custom_call.1} parent=1 // pred_fallthru
      _
    // Predicated region
    $region98: #{tpu_custom_call.1} parent=1 // pred_check
      _
    $region99: #{tpu_custom_call.1} parent=1 // pred_check_branch
      %933 = sbr.rel (0) target = $region101
    $region100: #{tpu_custom_call.1} parent=1 // pred_region
      %935 = dma.done [#allocation13], 128
    $region101: #{tpu_custom_call.1} parent=1 // pred_fallthru
      _
    %936 = vsyncpa [#allocation3], 1
    %937 = vsyncpa [#allocation6], 1
    %938 = vsyncpa [#allocation9], 1
    %939 = vsyncpa [#allocation4], 1
    %940 = vsyncpa [#allocation13], 1

</llo_original>
